<compile_context>
chip_gen: v5e
topology: v5e:2x2
jax: 0.10.0
libtpu: 0.0.40
codegen_flags: <defaults>
</compile_context>

<pallas_src>
import functools
import math

import jax
import jax.numpy as jnp
import numpy as np
from jax import lax
from jax.experimental import pallas as pl
from jax.experimental.pallas import tpu as pltpu


# ----------------------------- kernel: one H-band of the 5x5 'same' conv -------------------
def _conv_band_kernel(x_ref, w_ref, o_ref, *, KH, KW, Wp, L):
    # x_ref: (1, 1, Cin, Lb_in) bf16 -- this band's padded rows (+ KH-1 halo rows),
    #                                   flattened with row stride Wp, +KW-1 tail.
    # w_ref: (Cout, KH*KW*Cin)  bf16 -- folded filters, columns ordered (kh, kw, c).
    # o_ref: (1, Cout, L)            -- L = BH*Wp conv outputs (row stride Wp).
    cols = []
    for kh in range(KH):
        # one read per kh, then KW static lane shifts of the loaded rows
        row = x_ref[0, 0, :, kh * Wp: kh * Wp + L + KW - 1]          # (Cin, L+KW-1)
        for kw in range(KW):
            cols.append(row[:, kw:kw + L])
    col = jnp.concatenate(cols, axis=0)                               # (KH*KW*Cin, L), VMEM only
    # single K = KH*KW*Cin matmul on the MXU, f32 accumulation, cast at the lane-dense store
    o_ref[0] = jnp.dot(w_ref[...], col,
                       preferred_element_type=jnp.float32).astype(o_ref.dtype)


# ----------------------------- band-size selection ------------------------------------------
def _pick_band_rows(H, Wp, Cout, Cin, KK, out_bytes, budget_bytes=18 << 20):
    """Rows per band: biggest 128-lane-aligned band that fits the VMEM budget."""
    # dominant per-band-row VMEM terms: double-buffered output + bf16 im2col staging
    per_row = Wp * (2 * Cout * out_bytes + KK * Cin * 2)
    max_rows = max(1, budget_bytes // per_row)
    if max_rows >= H:
        return H                                    # whole image fits in one band
    lane_rows = 128 // math.gcd(Wp, 128)            # rows per 128-lane-aligned flattened chunk
    if lane_rows <= max_rows:
        return (max_rows // lane_rows) * lane_rows
    # TODO(synk): very wide odd-width images fall back to a single resident band (legal but
    # VMEM-heavy); a 4-D (N, band, Cout, L) output layout would lift this.
    return H


# ----------------------------- wrapper -------------------------------------------------------
def fused_constrained_conv_forward(x_nchw, weight, rgb_weight, one_middle,
                                   *, out_dtype=jnp.bfloat16, band_rows=None):
    N, Cin, H, W = x_nchw.shape
    NC, Cin_w, KH, KW = weight.shape
    NR = rgb_weight.shape[0]
    assert Cin == Cin_w and rgb_weight.shape[1] == Cin and KH == KW
    Cout = NC + NR
    KK = KH * KW
    pad = (KH - 1) // 2                              # 'same' padding, stride 1, odd kernel
    Wp = W + 2 * pad

    # ---- constrained projection + weight folding: tiny, plain JAX (fuses into one XLA op) ----
    w = weight.reshape(NC * Cin, KK).astype(jnp.float32)
    w = w - jnp.mean(w, axis=1, keepdims=True) + 1.0 / (KK - 1)
    w = w - (w + 1.0) * one_middle.reshape(1, KK).astype(jnp.float32)    # center tap -> -1
    w_full = jnp.concatenate([w.reshape(NC, Cin, KH, KW),
                              rgb_weight.astype(jnp.float32)], axis=0)
    # columns ordered (kh, kw, c) to match the kernel's im2col staging order
    w_mat = jnp.transpose(w_full, (0, 2, 3, 1)).reshape(Cout, KK * Cin).astype(jnp.bfloat16)

    # ---- band selection ----
    out_bytes = jnp.dtype(out_dtype).itemsize
    BH = band_rows or _pick_band_rows(H, Wp, Cout, Cin, KK, out_bytes)
    num_bands = -(-H // BH)                          # cdiv
    H_banded = num_bands * BH
    L_band = BH * Wp
    Lb_in = (BH + KH - 1) * Wp + (KW - 1)            # band rows + halo, +KW-1 tail for last tap

    # ---- padded, flattened, pre-banded bf16 input (halo duplication only, no HBM im2col) ----
    xp = jnp.pad(x_nchw.astype(jnp.bfloat16),
                 ((0, 0), (0, 0), (pad, pad + (H_banded - H)), (pad, pad)))
    xf = jnp.pad(xp.reshape(N, Cin, (H_banded + KH - 1) * Wp),
                 ((0, 0), (0, 0), (0, KW - 1)))
    xband = jnp.stack([xf[:, :, b * L_band: b * L_band + Lb_in]
                       for b in range(num_bands)], axis=1)     # (N, num_bands, Cin, Lb_in)

    cost = pl.CostEstimate(
        flops=2 * N * Cout * H_banded * Wp * KK * Cin,
        transcendentals=0,
        bytes_accessed=int(xband.size) * 2 + int(w_mat.size) * 2
        + N * Cout * H_banded * Wp * int(out_bytes))

    y_flat = pl.pallas_call(
        functools.partial(_conv_band_kernel, KH=KH, KW=KW, Wp=Wp, L=L_band),
        out_shape=jax.ShapeDtypeStruct((N, Cout, H_banded * Wp), out_dtype),
        grid=(N, num_bands),
        in_specs=[
            pl.BlockSpec((1, 1, Cin, Lb_in), lambda n, b: (n, b, 0, 0)),
            pl.BlockSpec((Cout, KK * Cin), lambda n, b: (0, 0)),      # weight stays resident
        ],
        out_specs=pl.BlockSpec((1, Cout, L_band), lambda n, b: (n, 0, b)),
        compiler_params=pltpu.CompilerParams(
            dimension_semantics=("parallel", "parallel"),
            vmem_limit_bytes=48 * 1024 * 1024),
        cost_estimate=cost,
    )(xband, w_mat)

    # drop the stride-padding columns / extra band rows -> native NCHW result
    # TODO(synk): if the downstream consumer can read the Wp-strided layout directly, skip this
    # slice (it is the only HBM pass over the output outside the kernel).
    return y_flat.reshape(N, Cout, H_banded, Wp)[:, :, :H, :W]


# ----------------------------- pure-JAX reference (matches the PyTorch module) --------------
def reference_forward(x, weight, rgb_weight, one_middle):
    NC, Cin, KH, KW = weight.shape
    kk = KH * KW
    w = weight.reshape(-1, kk)
    w = w - w.mean(axis=1, keepdims=True) + 1.0 / (kk - 1)
    w = w - (w + 1.0) * one_middle
    w_full = jnp.concatenate([w.reshape(NC, Cin, KH, KW), rgb_weight], axis=0)
    pad = (KH - 1) // 2
    return lax.conv_general_dilated(
        x, w_full, window_strides=(1, 1),
        padding=[(pad, pad), (pad, pad)],
        dimension_numbers=("NCHW", "OIHW", "NCHW"),
        precision=lax.Precision.HIGHEST)


if __name__ == "__main__":
    key = jax.random.PRNGKey(0)
    N, Cin, H, W = 2, 3, 16, 16
    ncf, nrf, K = 32, 32, 5

    ks = jax.random.split(key, 3)
    x = jax.random.normal(ks[0], (N, Cin, H, W), jnp.float32)
    weight = 0.05 * jax.random.normal(ks[1], (ncf, Cin, K, K), jnp.float32)
    rgb_weight = 0.05 * jax.random.normal(ks[2], (nrf, Cin, K, K), jnp.float32)
    one_middle = jnp.zeros((K * K,), jnp.float32).at[(K * K) // 2].set(1.0)

    out = fused_constrained_conv_forward(x, weight, rgb_weight, one_middle)
    out = jax.block_until_ready(out)
    assert out.shape == (N, ncf + nrf, H, W), out.shape

    ref = reference_forward(x, weight, rgb_weight, one_middle)
    # bf16 MXU operands + bf16 output store vs f32 reference -> loose-ish tolerance
    np.testing.assert_allclose(np.asarray(out, dtype=np.float32), np.asarray(ref),
                               rtol=2e-2, atol=5e-2)
    print("KERNEL_OK")
</pallas_src>

<mosaic_0001>
module attributes {stable_mosaic.version = 11 : i64} {
  func.func @_conv_band_kernel(%arg0: i32, %arg1: i32, %arg2: memref<1x1x3x404xbf16, #tpu.memory_space<vmem>>, %arg3: memref<64x75xbf16, #tpu.memory_space<vmem>>, %arg4: memref<1x64x320xbf16, #tpu.memory_space<vmem>>) attributes {dimension_semantics = [#tpu.dimension_semantics<parallel>, #tpu.dimension_semantics<parallel>], iteration_bounds = array<i64: 2, 1>, scalar_prefetch = 0 : i64, scratch_operands = 0 : i64, tpu.core_type = #tpu.core_type<tc>, window_params = [{transform_indices = @transform_0, window_bounds = array<i64: 1, 1, 3, 404>}, {pipeline_mode = #tpu.pipeline_mode<synchronous>, transform_indices = @transform_1, window_bounds = array<i64: 64, 75>}, {transform_indices = @transform_2, window_bounds = array<i64: 1, 64, 320>}]} {
    %c0 = arith.constant 0 : index
    %c0_0 = arith.constant 0 : index
    %c0_1 = arith.constant 0 : index
    %c0_2 = arith.constant 0 : index
    %0 = vector.load %arg2[%c0, %c0_0, %c0_1, %c0_2] : memref<1x1x3x404xbf16, #tpu.memory_space<vmem>>, vector<1x1x3x324xbf16>
    %1 = vector.shape_cast %0 : vector<1x1x3x324xbf16> to vector<3x324xbf16>
    %2 = vector.extract_strided_slice %1 {offsets = [0, 0], sizes = [3, 320], strides = [1, 1]} : vector<3x324xbf16> to vector<3x320xbf16>
    %3 = vector.extract_strided_slice %1 {offsets = [0, 1], sizes = [3, 320], strides = [1, 1]} : vector<3x324xbf16> to vector<3x320xbf16>
    %4 = vector.extract_strided_slice %1 {offsets = [0, 2], sizes = [3, 320], strides = [1, 1]} : vector<3x324xbf16> to vector<3x320xbf16>
    %5 = vector.extract_strided_slice %1 {offsets = [0, 3], sizes = [3, 320], strides = [1, 1]} : vector<3x324xbf16> to vector<3x320xbf16>
    %6 = vector.extract_strided_slice %1 {offsets = [0, 4], sizes = [3, 320], strides = [1, 1]} : vector<3x324xbf16> to vector<3x320xbf16>
    %c0_3 = arith.constant 0 : index
    %c0_4 = arith.constant 0 : index
    %c0_5 = arith.constant 0 : index
    %c20 = arith.constant 20 : index
    %7 = vector.load %arg2[%c0_3, %c0_4, %c0_5, %c20] : memref<1x1x3x404xbf16, #tpu.memory_space<vmem>>, vector<1x1x3x324xbf16>
    %8 = vector.shape_cast %7 : vector<1x1x3x324xbf16> to vector<3x324xbf16>
    %9 = vector.extract_strided_slice %8 {offsets = [0, 0], sizes = [3, 320], strides = [1, 1]} : vector<3x324xbf16> to vector<3x320xbf16>
    %10 = vector.extract_strided_slice %8 {offsets = [0, 1], sizes = [3, 320], strides = [1, 1]} : vector<3x324xbf16> to vector<3x320xbf16>
    %11 = vector.extract_strided_slice %8 {offsets = [0, 2], sizes = [3, 320], strides = [1, 1]} : vector<3x324xbf16> to vector<3x320xbf16>
    %12 = vector.extract_strided_slice %8 {offsets = [0, 3], sizes = [3, 320], strides = [1, 1]} : vector<3x324xbf16> to vector<3x320xbf16>
    %13 = vector.extract_strided_slice %8 {offsets = [0, 4], sizes = [3, 320], strides = [1, 1]} : vector<3x324xbf16> to vector<3x320xbf16>
    %c0_6 = arith.constant 0 : index
    %c0_7 = arith.constant 0 : index
    %c0_8 = arith.constant 0 : index
    %c40 = arith.constant 40 : index
    %14 = vector.load %arg2[%c0_6, %c0_7, %c0_8, %c40] : memref<1x1x3x404xbf16, #tpu.memory_space<vmem>>, vector<1x1x3x324xbf16>
    %15 = vector.shape_cast %14 : vector<1x1x3x324xbf16> to vector<3x324xbf16>
    %16 = vector.extract_strided_slice %15 {offsets = [0, 0], sizes = [3, 320], strides = [1, 1]} : vector<3x324xbf16> to vector<3x320xbf16>
    %17 = vector.extract_strided_slice %15 {offsets = [0, 1], sizes = [3, 320], strides = [1, 1]} : vector<3x324xbf16> to vector<3x320xbf16>
    %18 = vector.extract_strided_slice %15 {offsets = [0, 2], sizes = [3, 320], strides = [1, 1]} : vector<3x324xbf16> to vector<3x320xbf16>
    %19 = vector.extract_strided_slice %15 {offsets = [0, 3], sizes = [3, 320], strides = [1, 1]} : vector<3x324xbf16> to vector<3x320xbf16>
    %20 = vector.extract_strided_slice %15 {offsets = [0, 4], sizes = [3, 320], strides = [1, 1]} : vector<3x324xbf16> to vector<3x320xbf16>
    %c0_9 = arith.constant 0 : index
    %c0_10 = arith.constant 0 : index
    %c0_11 = arith.constant 0 : index
    %c60 = arith.constant 60 : index
    %21 = vector.load %arg2[%c0_9, %c0_10, %c0_11, %c60] : memref<1x1x3x404xbf16, #tpu.memory_space<vmem>>, vector<1x1x3x324xbf16>
    %22 = vector.shape_cast %21 : vector<1x1x3x324xbf16> to vector<3x324xbf16>
    %23 = vector.extract_strided_slice %22 {offsets = [0, 0], sizes = [3, 320], strides = [1, 1]} : vector<3x324xbf16> to vector<3x320xbf16>
    %24 = vector.extract_strided_slice %22 {offsets = [0, 1], sizes = [3, 320], strides = [1, 1]} : vector<3x324xbf16> to vector<3x320xbf16>
    %25 = vector.extract_strided_slice %22 {offsets = [0, 2], sizes = [3, 320], strides = [1, 1]} : vector<3x324xbf16> to vector<3x320xbf16>
    %26 = vector.extract_strided_slice %22 {offsets = [0, 3], sizes = [3, 320], strides = [1, 1]} : vector<3x324xbf16> to vector<3x320xbf16>
    %27 = vector.extract_strided_slice %22 {offsets = [0, 4], sizes = [3, 320], strides = [1, 1]} : vector<3x324xbf16> to vector<3x320xbf16>
    %c0_12 = arith.constant 0 : index
    %c0_13 = arith.constant 0 : index
    %c0_14 = arith.constant 0 : index
    %c80 = arith.constant 80 : index
    %28 = vector.load %arg2[%c0_12, %c0_13, %c0_14, %c80] : memref<1x1x3x404xbf16, #tpu.memory_space<vmem>>, vector<1x1x3x324xbf16>
    %29 = vector.shape_cast %28 : vector<1x1x3x324xbf16> to vector<3x324xbf16>
    %30 = vector.extract_strided_slice %29 {offsets = [0, 0], sizes = [3, 320], strides = [1, 1]} : vector<3x324xbf16> to vector<3x320xbf16>
    %31 = vector.extract_strided_slice %29 {offsets = [0, 1], sizes = [3, 320], strides = [1, 1]} : vector<3x324xbf16> to vector<3x320xbf16>
    %32 = vector.extract_strided_slice %29 {offsets = [0, 2], sizes = [3, 320], strides = [1, 1]} : vector<3x324xbf16> to vector<3x320xbf16>
    %33 = vector.extract_strided_slice %29 {offsets = [0, 3], sizes = [3, 320], strides = [1, 1]} : vector<3x324xbf16> to vector<3x320xbf16>
    %34 = vector.extract_strided_slice %29 {offsets = [0, 4], sizes = [3, 320], strides = [1, 1]} : vector<3x324xbf16> to vector<3x320xbf16>
    %35 = tpu.concatenate %2, %3, %4, %5, %6, %9, %10, %11, %12, %13, %16, %17, %18, %19, %20, %23 in 0 : vector<3x320xbf16>, vector<3x320xbf16>, vector<3x320xbf16>, vector<3x320xbf16>, vector<3x320xbf16>, vector<3x320xbf16>, vector<3x320xbf16>, vector<3x320xbf16>, vector<3x320xbf16>, vector<3x320xbf16>, vector<3x320xbf16>, vector<3x320xbf16>, vector<3x320xbf16>, vector<3x320xbf16>, vector<3x320xbf16>, vector<3x320xbf16> -> vector<48x320xbf16>
    %36 = tpu.concatenate %24, %25, %26, %27, %30, %31, %32, %33, %34 in 0 : vector<3x320xbf16>, vector<3x320xbf16>, vector<3x320xbf16>, vector<3x320xbf16>, vector<3x320xbf16>, vector<3x320xbf16>, vector<3x320xbf16>, vector<3x320xbf16>, vector<3x320xbf16> -> vector<27x320xbf16>
    %37 = tpu.concatenate %35, %36 in 0 : vector<48x320xbf16>, vector<27x320xbf16> -> vector<75x320xbf16>
    %c0_15 = arith.constant 0 : index
    %c0_16 = arith.constant 0 : index
    %38 = vector.load %arg3[%c0_15, %c0_16] : memref<64x75xbf16, #tpu.memory_space<vmem>>, vector<64x75xbf16>
    %cst = arith.constant dense<0.000000e+00> : vector<64x320xf32>
    %39 = tpu.matmul %38, %37, %cst {dimension_numbers = #tpu.dot_dimension_numbers<[1], [0], [0], [1], [0, 0, 1, 1], [], []>} : vector<64x75xbf16>, vector<75x320xbf16>, vector<64x320xf32> -> vector<64x320xf32>
    %40 = arith.truncf %39 : vector<64x320xf32> to vector<64x320xbf16>
    %c0_17 = arith.constant 0 : index
    %c0_18 = arith.constant 0 : index
    %c0_19 = arith.constant 0 : index
    %41 = vector.load %arg4[%c0_17, %c0_18, %c0_19] : memref<1x64x320xbf16, #tpu.memory_space<vmem>>, vector<1x64x320xbf16>
    %42 = vector.shape_cast %41 : vector<1x64x320xbf16> to vector<64x320xbf16>
    %43 = vector.shape_cast %40 : vector<64x320xbf16> to vector<1x64x320xbf16>
    tpu.vector_store %arg4[%c0_17, %c0_18, %c0_19], %43 {strides = array<i32>} : memref<1x64x320xbf16, #tpu.memory_space<vmem>>, vector<1x64x320xbf16>,
    return
  }
  func.func @transform_0(%arg0: i32, %arg1: i32) -> (i32, i32, i32, i32) {
    %c0_i32 = arith.constant 0 : i32
    %c0_i32_0 = arith.constant 0 : i32
    %c0_i32_1 = arith.constant 0 : i32
    return %arg0, %arg1, %c0_i32, %c0_i32_0 : i32, i32, i32, i32
  }
  func.func @transform_1(%arg0: i32, %arg1: i32) -> (i32, i32) {
    %c0_i32 = arith.constant 0 : i32
    %c0_i32_0 = arith.constant 0 : i32
    %c0_i32_1 = arith.constant 0 : i32
    return %c0_i32, %c0_i32_0 : i32, i32
  }
  func.func @transform_2(%arg0: i32, %arg1: i32) -> (i32, i32, i32) {
    %c0_i32 = arith.constant 0 : i32
    %c0_i32_0 = arith.constant 0 : i32
    return %arg0, %c0_i32, %arg1 : i32, i32, i32
  }
}

</mosaic_0001>

<llo_original>
// kernel: tpu_custom_call.1
$region0: #{tpu_custom_call.1}
  #allocation0 [shape = 'u32[]', space=smem, size = 0x4, offset = 0x4, fixed_abs, tag = 'smem constant byte address 0x4 - core index']
  #allocation1 [shape = 'u32[72,128]{1,0:T(1,128)}', space=vmem, size = 0x9000, scoped, tag = 'internal scratch']
  %s0 = inlined_call_operand.vmem [shape: bf16[2,1,3,404], index: 0, kind: input, shape index: {}]
  %s1 = inlined_call_operand.hbm [shape: bf16[64,75], index: 1, kind: input, shape index: {}]
  %s2 = inlined_call_operand.hbm [shape: bf16[2,64,320], index: 2, kind: output, shape index: {}]
  %s3 = sld [smem:[#allocation0]]
  $region45: #{tpu_custom_call.1} parent=0
    _
  %s5 = ssub.s32 1, %s3
  %s6 = scalar_select 0, %s5, %s3
  $region1: #{tpu_custom_call.1} parent=0
    #allocation2 [shape = 'u8[16384]{0}', space=vmem, size = 0x4000, scoped, tag = 'input window, operand 1, single buffered']
    #allocation3 [shape = 's32[2]{0}', space=sflag, size = 0x8, scoped, tag = 'scoped memory for tpu_custom_call.1']
    #allocation4 [shape = 's32[2]{0}', space=sflag, size = 0x8, scoped, tag = 'scoped memory for tpu_custom_call.1']
    #allocation5 [shape = 'u8[98304]{0}', space=vmem, size = 0x18000, scoped, tag = 'output window, operand 0']
    %7 = vsyncpa [#allocation3], 0
    %8 = vsyncpa [#allocation4], 0
    %s9 = scalar_lea.sflag [#allocation4], 1
    %10 = vsyncpa %s9, 0
    loop: start=0, step=1, limit=4
    $region2: #{tpu_custom_call.1} parent=1 // loop_pre_header
      _
    $region3: #{tpu_custom_call.1} parent=1 // loop_header
      %s12 = sphi 0, %s16
      %p13 = scmp.ge.s32.totalorder %s12, 4
      %s19 = sphi 0, %s31
      %s20 = sphi 0, %s27
      %s21 = sphi 0, %s19
      %s22 = sphi 0, %s20
      %s23 = sphi 0, %s21
      %s24 = sphi 0, %s22
      %s36 = sphi 0, %s38
      %s39 = sphi 0, %s36
      %s40 = sphi 0, %s39
      %s56 = sphi 0, %s40
      %s60 = sphi 0, %s60
      %s62 = sphi 0, %s60
      %s63 = sphi 0, %s62
      %s77 = sphi 0, %s63
      %s85 = sphi 0, %s87
      %s88 = sphi 0, %s85
      %s89 = sphi 0, %s88
      %s105 = sphi 0, %s89
    $region4: #{tpu_custom_call.1} parent=1 // loop_header_branch
      %15 = sbr.rel (%p13) target = $region8
    $region5: #{tpu_custom_call.1} parent=1 // loop_body
      %s17 = ssub.s32 %s12, 1
      %s18 = ssub.s32 %s12, 2
      %s25 = sadd.s32 1, %s20
      %p26 = scmp.ge.s32.totalorder %s25, 1
      %s27 = scalar_select %p26, 0, %s25
      %s28 = sadd.s32 1, %s19
      %s29 = scalar_select %p26, %s28, %s19
      %p30 = scmp.ge.s32.totalorder %s29, 2
      %s31 = scalar_select %p30, 0, %s29
      %s32 = ssub.s32 %s19, %s31
      %s33 = ssub.s32 %s20, %s27
      %s34 = sor.u32 %s32, %s33
      %p35 = scmp.eq.s32.totalorder %s34, 0
      %s37 = sadd.s32 %s36, 1
      %s38 = scalar_select %p35, %s36, %s37
      %p41 = pneg %p35
      %p42 = scmp.eq.s32.totalorder %s12, 1
      %p43 = por %p41, %p42
      %p44 = scmp.ne.s32.totalorder %s36, %s39
      %p45 = scmp.eq.s32.totalorder %s12, 0
      %p46 = por %p44, %p45
      %p47 = scmp.ne.s32.totalorder %s36, %s39
      %p48 = scmp.eq.s32.totalorder %s17, 1
      %p49 = por %p47, %p48
      %p50 = scmp.ne.s32.totalorder %s39, %s40
      %p51 = scmp.eq.s32.totalorder %s17, 0
      %p52 = por %p50, %p51
      %p53 = scmp.ne.s32.totalorder %s39, %s40
      %p54 = scmp.eq.s32.totalorder %s18, 1
      %p55 = por %p53, %p54
      %p57 = scmp.ne.s32.totalorder %s40, %s56
      %p58 = scmp.eq.s32.totalorder %s18, 0
      %p59 = por %p57, %p58
      %s61 = sadd.s32 %s60, 1
      %p64 = scmp.eq.s32.totalorder %s12, 1
      %p65 = scmp.ne.s32.totalorder %s60, %s62
      %p66 = scmp.eq.s32.totalorder %s12, 0
      %p67 = por %p65, %p66
      %p68 = scmp.ne.s32.totalorder %s60, %s62
      %p69 = scmp.eq.s32.totalorder %s17, 1
      %p70 = por %p68, %p69
      %p71 = scmp.ne.s32.totalorder %s62, %s63
      %p72 = scmp.eq.s32.totalorder %s17, 0
      %p73 = por %p71, %p72
      %p74 = scmp.ne.s32.totalorder %s62, %s63
      %p75 = scmp.eq.s32.totalorder %s18, 1
      %p76 = por %p74, %p75
      %p78 = scmp.ne.s32.totalorder %s63, %s77
      %p79 = scmp.eq.s32.totalorder %s18, 0
      %p80 = por %p78, %p79
      %s81 = ssub.s32 %s19, %s31
      %s82 = ssub.s32 %s20, %s27
      %s83 = sor.u32 %s81, %s82
      %p84 = scmp.eq.s32.totalorder %s83, 0
      %s86 = sadd.s32 %s85, 1
      %s87 = scalar_select %p84, %s85, %s86
      %p90 = pneg %p84
      %p91 = scmp.eq.s32.totalorder %s12, 1
      %p92 = por %p90, %p91
      %p93 = scmp.ne.s32.totalorder %s85, %s88
      %p94 = scmp.eq.s32.totalorder %s12, 0
      %p95 = por %p93, %p94
      %p96 = scmp.ne.s32.totalorder %s85, %s88
      %p97 = scmp.eq.s32.totalorder %s17, 1
      %p98 = por %p96, %p97
      %p99 = scmp.ne.s32.totalorder %s88, %s89
      %p100 = scmp.eq.s32.totalorder %s17, 0
      %p101 = por %p99, %p100
      %p102 = scmp.ne.s32.totalorder %s88, %s89
      %p103 = scmp.eq.s32.totalorder %s18, 1
      %p104 = por %p102, %p103
      %p106 = scmp.ne.s32.totalorder %s89, %s105
      %p107 = scmp.eq.s32.totalorder %s18, 0
      %p108 = por %p106, %p107
      %p109 = scmp.le.s32.totalorder 1, %s12
      %p110 = scmp.lt.s32.totalorder %s12, 3
      %p111 = pnand %p109, %p110
      %p112 = pneg %p111
      // Predicated region
      $region9: #{tpu_custom_call.1} parent=5 // pred_check
        _
      $region10: #{tpu_custom_call.1} parent=5 // pred_check_branch
        %114 = sbr.rel (%p111) target = $region12
      $region11: #{tpu_custom_call.1} parent=5 // pred_region
        %s115 = ssub.s32 %s12, 1
        // Predicated region
        $region13: #{tpu_custom_call.1} parent=11 // pred_check
          %p116 = pneg %p73
        $region14: #{tpu_custom_call.1} parent=11 // pred_check_branch
          %118 = sbr.rel (%p116) target = $region16
        $region15: #{tpu_custom_call.1} parent=11 // pred_region
          %120 = vsyncadd [#allocation3], 0
          %s121 = sshll.u32 %s1, 4
          %s122 = int_to_ptr.hbm [resolvable:$true] %s121
          %s123 = sshll.u32 [#allocation2], 4
          %s124 = int_to_ptr.vmem [resolvable:$true] %s123
          %129 = dma.hbm_to_vmem [thread:$0]  %s122, 512, %s124, [#allocation3], 64, 64, 4
        $region16: #{tpu_custom_call.1} parent=11 // pred_fallthru
          _
      $region12: #{tpu_custom_call.1} parent=5 // pred_fallthru
        _
      %p130 = scmp.lt.s32.totalorder %s12, 2
      // Predicated region
      $region17: #{tpu_custom_call.1} parent=5 // pred_check
        %p131 = pneg %p130
      $region18: #{tpu_custom_call.1} parent=5 // pred_check_branch
        %133 = sbr.rel (%p131) target = $region20
      $region19: #{tpu_custom_call.1} parent=5 // pred_region
        // Predicated region
        $region21: #{tpu_custom_call.1} parent=19 // pred_check
          %p134 = pneg %p46
        $region22: #{tpu_custom_call.1} parent=19 // pred_check_branch
          %136 = sbr.rel (%p134) target = $region24
        $region23: #{tpu_custom_call.1} parent=19 // pred_region
          %p137 = scmp.lt.s32.totalorder %s19, 1
          %s138 = scalar_select %p137, %s19, 1
          %p139 = scmp.lt.s32.totalorder %s20, 0
          %s140 = scalar_select %p139, %s20, 0
          %s141 = smul.addr %s140, 4
          %s142 = smul.addr %s138, 4
          %s143 = sadd.s32 %s141, %s142
          %s144 = smul.addr %s143, 2
          %s145 = scalar_lea.vmem %s0, %s144
        $region24: #{tpu_custom_call.1} parent=19 // pred_fallthru
          _
      $region20: #{tpu_custom_call.1} parent=5 // pred_fallthru
        _
      %p146 = scmp.le.s32.totalorder 1, %s12
      %p147 = scmp.lt.s32.totalorder %s12, 3
      %p148 = pnand %p146, %p147
      %p149 = pneg %p148
      // Predicated region
      $region25: #{tpu_custom_call.1} parent=5 // pred_check
        _
      $region26: #{tpu_custom_call.1} parent=5 // pred_check_branch
        %151 = sbr.rel (%p148) target = $region28
      $region27: #{tpu_custom_call.1} parent=5 // pred_region
        %s152 = ssub.s32 %s12, 1
        // Predicated region
        $region29: #{tpu_custom_call.1} parent=27 // pred_check
          %p153 = pneg %p73
        $region30: #{tpu_custom_call.1} parent=27 // pred_check_branch
          %155 = sbr.rel (%p153) target = $region32
        $region31: #{tpu_custom_call.1} parent=27 // pred_region
          %157 = dma.done [#allocation3], 512
        $region32: #{tpu_custom_call.1} parent=27 // pred_fallthru
          _
        %p158 = scmp.lt.s32.totalorder %s21, 1
        %s159 = scalar_select %p158, %s21, 1
        %p160 = scmp.lt.s32.totalorder %s22, 0
        %s161 = scalar_select %p160, %s22, 0
        %s162 = smul.addr %s161, 4
        %s163 = smul.addr %s159, 4
        %s164 = sadd.s32 %s162, %s163
        %s165 = smul.addr %s164, 2
        %s166 = scalar_lea.vmem %s0, %s165
        %p167 = pneg %p52
        %p168 = pneg %p49
        %p169 = pneg %p73
        %p170 = pneg %p70
        %p171 = pneg %p101
        %p172 = pneg %p98
        %s173 = sand.u32 %s88, 1
        %s174 = scalar_lea.sflag [#allocation4], %s173
        %s175 = sand.u32 %s88, 1
        %s176 = smul.addr %s175, 96
        %s177 = scalar_lea.vmem [#allocation5], %s176
        %p178 = scmp.lt.s32.totalorder %s21, 1
        %s179 = scalar_select %p178, %s21, 1
        %p180 = scmp.lt.s32.totalorder %s22, 0
        %s181 = scalar_select %p180, %s22, 0
        %s182 = smul.addr %s181, 4
        %s183 = smul.addr %s179, 4
        %s184 = sadd.s32 %s182, %s183
        %s185 = smul.addr %s184, 2
        %s186 = scalar_lea.vmem %s0, %s185
        %s187 = smul.u32 3, %s22
        %v189 = vld [vmem:[%s186] sm:$0x3f]
        %v190 = vld [vmem:[%s186] sm:$0xff]
        %192 = vst [vmem:[#allocation1] ss:$4 sm:$0xff] %v189
        %v193 = vld.sshfl [vmem:[#allocation1] sm:$0xff pattern:$0x73625140]
        %v194 = vld.sshfl [vmem:[#allocation1 + $0x8] sm:$0xff pattern:$0x73625140]
        %v195 = vld.sshfl [vmem:[#allocation1 + $0x10] sm:$0xff pattern:$0x73625140]
        %199 = vst [vmem:[#allocation1] ss:$4 sm:$0xff] %v189
        %v200 = vld.sshfl [vmem:[#allocation1] sm:$0xff pattern:$0x73625140]
        %v201 = vld.sshfl [vmem:[#allocation1 + $0x8] sm:$0xff pattern:$0x73625140]
        %v202 = vld.sshfl [vmem:[#allocation1 + $0x10] sm:$0xff pattern:$0x73625140]
        %v203 = vshrl.u32 %v200, 16
        %v205 = vrot.slane %v203, 6
        %v206 = vshll.u32 %v200, 16
        %v208 = vrot.slane %v206, 7
        %v209 = vor.u32 %v205, %v208
        %v210 = vshrl.u32 %v201, 16
        %v212 = vrot.slane %v210, 6
        %v213 = vshll.u32 %v201, 16
        %v215 = vrot.slane %v213, 7
        %v216 = vor.u32 %v212, %v215
        %v217 = vshrl.u32 %v202, 16
        %v219 = vrot.slane %v217, 6
        %v220 = vshll.u32 %v202, 16
        %v222 = vrot.slane %v220, 7
        %v223 = vor.u32 %v219, %v222
        %224 = vrot.lane.b32.xlu0 %v209, 127
        %v225 = vpop.permute.xlu0 %224
        %226 = vrot.lane.b32.xlu0 %v216, 127
        %v227 = vpop.permute.xlu0 %226
        %228 = vrot.lane.b32.xlu0 %v223, 127
        %v229 = vpop.permute.xlu0 %228
        %vm230 = vcmask 1039360
        %v231 = vsel %vm230, %v225, %v227
        %v232 = vsel %vm230, %v227, %v229
        %236 = vst [vmem:[#allocation1] ss:$4 sm:$0xff] %v189
        %v237 = vld.sshfl [vmem:[#allocation1] sm:$0xff pattern:$0x73625140]
        %v239 = vld.sshfl [vmem:[#allocation1 + $0x8] sm:$0xff pattern:$0x73625140]
        %v241 = vld.sshfl [vmem:[#allocation1 + $0x10] sm:$0xff pattern:$0x73625140]
        %v243 = vrot.slane %v237, 5
        %v244 = vrot.slane %v239, 5
        %v245 = vrot.slane %v241, 5
        %246 = vrot.lane.b32.xlu0 %v243, 126
        %v247 = vpop.permute.xlu0 %246
        %248 = vrot.lane.b32.xlu0 %v244, 126
        %v249 = vpop.permute.xlu0 %248
        %250 = vrot.lane.b32.xlu0 %v245, 126
        %v251 = vpop.permute.xlu0 %250
        %vm252 = vcmask 1031168
        %v253 = vsel %vm252, %v247, %v249
        %v254 = vsel %vm252, %v249, %v251
        %255 = vst [vmem:[#allocation1] ss:$4 sm:$0xff] %v189
        %v256 = vld.sshfl [vmem:[#allocation1] sm:$0xff pattern:$0x73625140]
        %v257 = vld.sshfl [vmem:[#allocation1 + $0x8] sm:$0xff pattern:$0x73625140]
        %v258 = vld.sshfl [vmem:[#allocation1 + $0x10] sm:$0xff pattern:$0x73625140]
        %v259 = vshrl.u32 %v256, 16
        %v261 = vrot.slane %v259, 3
        %v262 = vshll.u32 %v256, 16
        %v264 = vrot.slane %v262, 4
        %v265 = vor.u32 %v261, %v264
        %v266 = vshrl.u32 %v257, 16
        %v268 = vrot.slane %v266, 3
        %v269 = vshll.u32 %v257, 16
        %v271 = vrot.slane %v269, 4
        %v272 = vor.u32 %v268, %v271
        %v273 = vshrl.u32 %v258, 16
        %v275 = vrot.slane %v273, 3
        %v276 = vshll.u32 %v258, 16
        %v278 = vrot.slane %v276, 4
        %v279 = vor.u32 %v275, %v278
        %280 = vrot.lane.b32.xlu0 %v265, 125
        %v281 = vpop.permute.xlu0 %280
        %282 = vrot.lane.b32.xlu0 %v272, 125
        %v283 = vpop.permute.xlu0 %282
        %284 = vrot.lane.b32.xlu0 %v279, 125
        %v285 = vpop.permute.xlu0 %284
        %vm286 = vcmask 1022976
        %v287 = vsel %vm286, %v281, %v283
        %v288 = vsel %vm286, %v283, %v285
        %s292 = scalar_lea.vmem [#allocation1], 3
        %293 = vst [vmem:[%s292] ss:$4 sm:$0xff] %v189
        %v294 = vld.sshfl [vmem:[#allocation1] sm:$0xff pattern:$0x73625140]
        %v296 = vld.sshfl [vmem:[#allocation1 + $0x8] sm:$0xff pattern:$0x73625140]
        %v298 = vld.sshfl [vmem:[#allocation1 + $0x10] sm:$0xff pattern:$0x73625140]
        %300 = vrot.lane.b32.xlu0 %v294, 124
        %v301 = vpop.permute.xlu0 %300
        %302 = vrot.lane.b32.xlu0 %v296, 124
        %v303 = vpop.permute.xlu0 %302
        %304 = vrot.lane.b32.xlu0 %v298, 124
        %v305 = vpop.permute.xlu0 %304
        %vm306 = vcmask 1014784
        %v307 = vsel %vm306, %v301, %v303
        %v308 = vsel %vm306, %v303, %v305
        %309 = vst [vmem:[#allocation1] ss:$4 sm:$0xff] %v189
        %v310 = vld.sshfl [vmem:[#allocation1] sm:$0xff pattern:$0x73625140]
        %v311 = vld.sshfl [vmem:[#allocation1 + $0x8] sm:$0xff pattern:$0x73625140]
        %v312 = vld.sshfl [vmem:[#allocation1 + $0x10] sm:$0xff pattern:$0x73625140]
        %v313 = vshll.u32 %v310, 16
        %v315 = vrot.slane %v313, 1
        %v316 = vshll.u32 %v311, 16
        %v318 = vrot.slane %v316, 1
        %v319 = vshll.u32 %v312, 16
        %v321 = vrot.slane %v319, 1
        %v322 = vshrl.u32 %v310, 16
        %v324 = vor.u32 %v322, %v315
        %v325 = vshrl.u32 %v311, 16
        %v327 = vor.u32 %v325, %v318
        %v328 = vshrl.u32 %v312, 16
        %v330 = vor.u32 %v328, %v321
        %331 = vrot.lane.b32.xlu0 %v315, 108
        %v332 = vpop.permute.xlu0 %331
        %333 = vrot.lane.b32.xlu0 %v318, 108
        %v334 = vpop.permute.xlu0 %333
        %335 = vrot.lane.b32.xlu0 %v321, 108
        %v336 = vpop.permute.xlu0 %335
        %337 = vrot.lane.b32.xlu0 %v324, 108
        %v338 = vpop.permute.xlu0 %337
        %339 = vrot.lane.b32.xlu0 %v327, 108
        %v340 = vpop.permute.xlu0 %339
        %341 = vrot.lane.b32.xlu0 %v330, 108
        %v342 = vpop.permute.xlu0 %341
        %vm343 = vcmask 883712
        %v344 = vsel %vm343, %v332, %v334
        %v345 = vsel %vm343, %v334, %v336
        %v346 = vsel %vm343, %v338, %v340
        %v347 = vsel %vm343, %v340, %v342
        %351 = vst [vmem:[#allocation1] ss:$4 sm:$0xff] %v189
        %v352 = vld.sshfl [vmem:[#allocation1] sm:$0xff pattern:$0x73625140]
        %v354 = vld.sshfl [vmem:[#allocation1 + $0x8] sm:$0xff pattern:$0x73625140]
        %v356 = vld.sshfl [vmem:[#allocation1 + $0x10] sm:$0xff pattern:$0x73625140]
        %v358 = vrot.slane %v352, 7
        %v359 = vrot.slane %v354, 7
        %v360 = vrot.slane %v356, 7
        %361 = vrot.lane.b32.xlu0 %v358, 107
        %v362 = vpop.permute.xlu0 %361
        %363 = vrot.lane.b32.xlu0 %v359, 107
        %v364 = vpop.permute.xlu0 %363
        %365 = vrot.lane.b32.xlu0 %v360, 107
        %v366 = vpop.permute.xlu0 %365
        %vm367 = vcmask 875520
        %v368 = vsel %vm367, %v362, %v364
        %v369 = vsel %vm367, %v364, %v366
        %370 = vst [vmem:[#allocation1] ss:$4 sm:$0xff] %v189
        %v371 = vld.sshfl [vmem:[#allocation1] sm:$0xff pattern:$0x73625140]
        %v372 = vld.sshfl [vmem:[#allocation1 + $0x8] sm:$0xff pattern:$0x73625140]
        %v373 = vld.sshfl [vmem:[#allocation1 + $0x10] sm:$0xff pattern:$0x73625140]
        %v374 = vshrl.u32 %v371, 16
        %v376 = vrot.slane %v374, 5
        %v377 = vshll.u32 %v371, 16
        %v379 = vrot.slane %v377, 6
        %v380 = vor.u32 %v376, %v379
        %v381 = vshrl.u32 %v372, 16
        %v383 = vrot.slane %v381, 5
        %v384 = vshll.u32 %v372, 16
        %v386 = vrot.slane %v384, 6
        %v387 = vor.u32 %v383, %v386
        %v388 = vshrl.u32 %v373, 16
        %v390 = vrot.slane %v388, 5
        %v391 = vshll.u32 %v373, 16
        %v393 = vrot.slane %v391, 6
        %v394 = vor.u32 %v390, %v393
        %395 = vrot.lane.b32.xlu0 %v380, 106
        %v396 = vpop.permute.xlu0 %395
        %397 = vrot.lane.b32.xlu0 %v387, 106
        %v398 = vpop.permute.xlu0 %397
        %399 = vrot.lane.b32.xlu0 %v394, 106
        %v400 = vpop.permute.xlu0 %399
        %vm401 = vcmask 867328
        %v402 = vsel %vm401, %v396, %v398
        %v403 = vsel %vm401, %v398, %v400
        %s407 = scalar_lea.vmem [#allocation1], 2
        %408 = vst [vmem:[%s407] ss:$4 sm:$0xff] %v189
        %v409 = vld.sshfl [vmem:[#allocation1] sm:$0xff pattern:$0x73625140]
        %v411 = vld.sshfl [vmem:[#allocation1 + $0x8] sm:$0xff pattern:$0x73625140]
        %v413 = vld.sshfl [vmem:[#allocation1 + $0x10] sm:$0xff pattern:$0x73625140]
        %415 = vrot.lane.b32.xlu0 %v409, 105
        %v416 = vpop.permute.xlu0 %415
        %417 = vrot.lane.b32.xlu0 %v411, 105
        %v418 = vpop.permute.xlu0 %417
        %419 = vrot.lane.b32.xlu0 %v413, 105
        %v420 = vpop.permute.xlu0 %419
        %vm421 = vcmask 859136
        %v422 = vsel %vm421, %v416, %v418
        %v423 = vsel %vm421, %v418, %v420
        %424 = vst [vmem:[#allocation1] ss:$4 sm:$0xff] %v189
        %v425 = vld.sshfl [vmem:[#allocation1] sm:$0xff pattern:$0x73625140]
        %v426 = vld.sshfl [vmem:[#allocation1 + $0x8] sm:$0xff pattern:$0x73625140]
        %v427 = vld.sshfl [vmem:[#allocation1 + $0x10] sm:$0xff pattern:$0x73625140]
        %v428 = vshrl.u32 %v425, 16
        %v430 = vrot.slane %v428, 2
        %v431 = vshll.u32 %v425, 16
        %v433 = vrot.slane %v431, 3
        %v434 = vor.u32 %v430, %v433
        %v435 = vshrl.u32 %v426, 16
        %v437 = vrot.slane %v435, 2
        %v438 = vshll.u32 %v426, 16
        %v440 = vrot.slane %v438, 3
        %v441 = vor.u32 %v437, %v440
        %v442 = vshrl.u32 %v427, 16
        %v444 = vrot.slane %v442, 2
        %v445 = vshll.u32 %v427, 16
        %v447 = vrot.slane %v445, 3
        %v448 = vor.u32 %v444, %v447
        %449 = vrot.lane.b32.xlu0 %v434, 104
        %v450 = vpop.permute.xlu0 %449
        %451 = vrot.lane.b32.xlu0 %v441, 104
        %v452 = vpop.permute.xlu0 %451
        %453 = vrot.lane.b32.xlu0 %v448, 104
        %v454 = vpop.permute.xlu0 %453
        %vm455 = vcmask 850944
        %v456 = vsel %vm455, %v450, %v452
        %v457 = vsel %vm455, %v452, %v454
        %461 = vst [vmem:[#allocation1] ss:$4 sm:$0xff] %v189
        %v462 = vld.sshfl [vmem:[#allocation1] sm:$0xff pattern:$0x73625140]
        %v464 = vld.sshfl [vmem:[#allocation1 + $0x8] sm:$0xff pattern:$0x73625140]
        %v466 = vld.sshfl [vmem:[#allocation1 + $0x10] sm:$0xff pattern:$0x73625140]
        %v468 = vrot.slane %v462, 1
        %v469 = vrot.slane %v464, 1
        %v470 = vrot.slane %v466, 1
        %471 = vrot.lane.b32.xlu0 %v468, 88
        %v472 = vpop.permute.xlu0 %471
        %473 = vrot.lane.b32.xlu0 %v469, 88
        %v474 = vpop.permute.xlu0 %473
        %475 = vrot.lane.b32.xlu0 %v470, 88
        %v476 = vpop.permute.xlu0 %475
        %vm477 = vcmask 719872
        %v478 = vsel %vm477, %v472, %v474
        %v479 = vsel %vm477, %v474, %v476
        %483 = vst [vmem:[#allocation1] ss:$4 sm:$0xff] %v189
        %v484 = vld.sshfl [vmem:[#allocation1] sm:$0xff pattern:$0x73625140]
        %v485 = vld.sshfl [vmem:[#allocation1 + $0x8] sm:$0xff pattern:$0x73625140]
        %v486 = vld.sshfl [vmem:[#allocation1 + $0x10] sm:$0xff pattern:$0x73625140]
        %v487 = vshrl.u32 %v484, 16
        %v489 = vrot.slane %v487, 7
        %v490 = vshll.u32 %v484, 16
        %v492 = vor.u32 %v489, %v490
        %v493 = vshrl.u32 %v485, 16
        %v495 = vrot.slane %v493, 7
        %v496 = vshll.u32 %v485, 16
        %v498 = vor.u32 %v495, %v496
        %v499 = vshrl.u32 %v486, 16
        %v501 = vrot.slane %v499, 7
        %v502 = vshll.u32 %v486, 16
        %v504 = vor.u32 %v501, %v502
        %505 = vrot.lane.b32.xlu0 %v492, 87
        %v506 = vpop.permute.xlu0 %505
        %507 = vrot.lane.b32.xlu0 %v498, 87
        %v508 = vpop.permute.xlu0 %507
        %509 = vrot.lane.b32.xlu0 %v504, 87
        %v510 = vpop.permute.xlu0 %509
        %vm511 = vcmask 711680
        %v512 = vsel %vm511, %v506, %v508
        %v513 = vsel %vm511, %v508, %v510
        %s517 = scalar_lea.vmem [#allocation1], 1
        %518 = vst [vmem:[%s517] ss:$4 sm:$0xff] %v189
        %v519 = vld.sshfl [vmem:[#allocation1] sm:$0xff pattern:$0x73625140]
        %v521 = vld.sshfl [vmem:[#allocation1 + $0x8] sm:$0xff pattern:$0x73625140]
        %v523 = vld.sshfl [vmem:[#allocation1 + $0x10] sm:$0xff pattern:$0x73625140]
        %525 = vrot.lane.b32.xlu0 %v519, 86
        %v526 = vpop.permute.xlu0 %525
        %527 = vrot.lane.b32.xlu0 %v521, 86
        %v528 = vpop.permute.xlu0 %527
        %529 = vrot.lane.b32.xlu0 %v523, 86
        %v530 = vpop.permute.xlu0 %529
        %vm531 = vcmask 703488
        %v532 = vsel %vm531, %v526, %v528
        %v533 = vsel %vm531, %v528, %v530
        %534 = vst [vmem:[#allocation1] ss:$4 sm:$0xff] %v189
        %v535 = vld.sshfl [vmem:[#allocation1] sm:$0xff pattern:$0x73625140]
        %v536 = vld.sshfl [vmem:[#allocation1 + $0x8] sm:$0xff pattern:$0x73625140]
        %v537 = vld.sshfl [vmem:[#allocation1 + $0x10] sm:$0xff pattern:$0x73625140]
        %v538 = vshrl.u32 %v535, 16
        %v540 = vrot.slane %v538, 4
        %v541 = vshll.u32 %v535, 16
        %v543 = vrot.slane %v541, 5
        %v544 = vor.u32 %v540, %v543
        %v545 = vshrl.u32 %v536, 16
        %v547 = vrot.slane %v545, 4
        %v548 = vshll.u32 %v536, 16
        %v550 = vrot.slane %v548, 5
        %v551 = vor.u32 %v547, %v550
        %v552 = vshrl.u32 %v537, 16
        %v554 = vrot.slane %v552, 4
        %v555 = vshll.u32 %v537, 16
        %v557 = vrot.slane %v555, 5
        %v558 = vor.u32 %v554, %v557
        %559 = vrot.lane.b32.xlu0 %v544, 85
        %v560 = vpop.permute.xlu0 %559
        %561 = vrot.lane.b32.xlu0 %v551, 85
        %v562 = vpop.permute.xlu0 %561
        %563 = vrot.lane.b32.xlu0 %v558, 85
        %v564 = vpop.permute.xlu0 %563
        %vm565 = vcmask 695296
        %v566 = vsel %vm565, %v560, %v562
        %v567 = vsel %vm565, %v562, %v564
        %571 = vst [vmem:[#allocation1] ss:$4 sm:$0xff] %v189
        %v572 = vld.sshfl [vmem:[#allocation1] sm:$0xff pattern:$0x73625140]
        %v574 = vld.sshfl [vmem:[#allocation1 + $0x8] sm:$0xff pattern:$0x73625140]
        %v576 = vld.sshfl [vmem:[#allocation1 + $0x10] sm:$0xff pattern:$0x73625140]
        %v578 = vrot.slane %v572, 3
        %v579 = vrot.slane %v574, 3
        %v580 = vrot.slane %v576, 3
        %581 = vrot.lane.b32.xlu0 %v578, 84
        %v582 = vpop.permute.xlu0 %581
        %583 = vrot.lane.b32.xlu0 %v579, 84
        %v584 = vpop.permute.xlu0 %583
        %585 = vrot.lane.b32.xlu0 %v580, 84
        %v586 = vpop.permute.xlu0 %585
        %vm587 = vcmask 687104
        %v588 = vsel %vm587, %v582, %v584
        %v589 = vsel %vm587, %v584, %v586
        %590 = vst [vmem:[#allocation1] ss:$4 sm:$0xff] %v189
        %v591 = vld.sshfl [vmem:[#allocation1] sm:$0xff pattern:$0x73625140]
        %v592 = vld.sshfl [vmem:[#allocation1 + $0x8] sm:$0xff pattern:$0x73625140]
        %v593 = vld.sshfl [vmem:[#allocation1 + $0x10] sm:$0xff pattern:$0x73625140]
        %v594 = vshrl.u32 %v591, 16
        %v596 = vrot.slane %v594, 1
        %v597 = vshll.u32 %v591, 16
        %v599 = vrot.slane %v597, 2
        %v600 = vor.u32 %v596, %v599
        %v601 = vshrl.u32 %v592, 16
        %v603 = vrot.slane %v601, 1
        %v604 = vshll.u32 %v592, 16
        %v606 = vrot.slane %v604, 2
        %v607 = vor.u32 %v603, %v606
        %v608 = vshrl.u32 %v593, 16
        %v610 = vrot.slane %v608, 1
        %v611 = vshll.u32 %v593, 16
        %v613 = vrot.slane %v611, 2
        %v614 = vor.u32 %v610, %v613
        %615 = vrot.lane.b32.xlu0 %v600, 68
        %v616 = vpop.permute.xlu0 %615
        %617 = vrot.lane.b32.xlu0 %v607, 68
        %v618 = vpop.permute.xlu0 %617
        %619 = vrot.lane.b32.xlu0 %v614, 68
        %v620 = vpop.permute.xlu0 %619
        %vm621 = vcmask 556032
        %v622 = vsel %vm621, %v616, %v618
        %v623 = vsel %vm621, %v618, %v620
        %vm627 = vcmask 1041408
        %vm628 = vsmask.f32 1280
        %vm629 = vmand %vm627, %vm628
        %v630 = vsel %vm629, %v193, %v231
        %v631 = vsel %vm629, %v194, %v232
        %v632 = vsel %vm629, %v195, %v229
        %vm633 = vcmask 1042432
        %v636 = vsel %vm633, %v630, %v253
        %v640 = vsel %vm633, %v631, %v254
        %v644 = vsel %vm633, %v632, %v251
        %vm646 = vcmask 1044480
        %vm647 = vsmask.f32 4352
        %vm648 = vmand %vm646, %vm647
        %v649 = vsel %vm648, %v636, %v287
        %v650 = vsel %vm648, %v640, %v288
        %v651 = vsel %vm648, %v644, %v285
        %vm652 = vcmask 1045504
        %v655 = vsel %vm652, %v649, %v307
        %v659 = vsel %vm652, %v650, %v308
        %v663 = vsel %vm652, %v651, %v305
        %vm665 = vcmask 1047552
        %vm666 = vsmask.f32 7424
        %vm667 = vmand %vm665, %vm666
        %v668 = vsel %vm667, %v655, %v344
        %v669 = vsel %vm667, %v659, %v345
        %v670 = vsel %vm667, %v663, %v336
        %vm671 = vcmask 1040384
        %v674 = vsel %vm671, %v346, %v368
        %v678 = vsel %vm671, %v347, %v369
        %v682 = vsel %vm671, %v342, %v366
        %vm684 = vcmask 1042432
        %vm685 = vsmask.f32 2304
        %vm686 = vmand %vm684, %vm685
        %v687 = vsel %vm686, %v674, %v402
        %v688 = vsel %vm686, %v678, %v403
        %v689 = vsel %vm686, %v682, %v400
        %vm690 = vcmask 1043456
        %v693 = vsel %vm690, %v687, %v422
        %v697 = vsel %vm690, %v688, %v423
        %v701 = vsel %vm690, %v689, %v420
        %vm703 = vcmask 1045504
        %vm704 = vsmask.f32 5376
        %vm705 = vmand %vm703, %vm704
        %v706 = vsel %vm705, %v693, %v456
        %v707 = vsel %vm705, %v697, %v457
        %v708 = vsel %vm705, %v701, %v454
        %vm709 = vcmask 1046528
        %v712 = vsel %vm709, %v706, %v478
        %v716 = vsel %vm709, %v707, %v479
        %v720 = vsel %vm709, %v708, %v476
        %vm722 = vcmask 1040384
        %vm723 = vsmask.f32 256
        %vm724 = vmand %vm722, %vm723
        %v725 = vsel %vm724, %v478, %v512
        %v726 = vsel %vm724, %v479, %v513
        %v727 = vsel %vm724, %v476, %v510
        %vm728 = vcmask 1041408
        %v731 = vsel %vm728, %v725, %v532
        %v735 = vsel %vm728, %v726, %v533
        %v739 = vsel %vm728, %v727, %v530
        %vm741 = vcmask 1043456
        %vm742 = vsmask.f32 3328
        %vm743 = vmand %vm741, %vm742
        %v744 = vsel %vm743, %v731, %v566
        %v745 = vsel %vm743, %v735, %v567
        %v746 = vsel %vm743, %v739, %v564
        %vm747 = vcmask 1044480
        %v750 = vsel %vm747, %v744, %v588
        %v754 = vsel %vm747, %v745, %v589
        %v758 = vsel %vm747, %v746, %v586
        %vm760 = vcmask 1046528
        %vm761 = vsmask.f32 6400
        %vm762 = vmand %vm760, %vm761
        %v763 = vsel %vm762, %v750, %v622
        %v764 = vsel %vm762, %v754, %v623
        %v765 = vsel %vm762, %v758, %v620
        %766 = vst [vmem:[#allocation1] ss:$4 sm:$0xff] %v189
        %v767 = vld.sshfl [vmem:[#allocation1] sm:$0xff pattern:$0x73625140]
        %v768 = vld.sshfl [vmem:[#allocation1 + $0x8] sm:$0xff pattern:$0x73625140]
        %v769 = vld.sshfl [vmem:[#allocation1 + $0x10] sm:$0xff pattern:$0x73625140]
        %773 = vst [vmem:[#allocation1] ss:$4 sm:$0xff] %v189
        %v774 = vld.sshfl [vmem:[#allocation1] sm:$0xff pattern:$0x73625140]
        %v775 = vld.sshfl [vmem:[#allocation1 + $0x8] sm:$0xff pattern:$0x73625140]
        %v776 = vld.sshfl [vmem:[#allocation1 + $0x10] sm:$0xff pattern:$0x73625140]
        %v777 = vshrl.u32 %v774, 16
        %v779 = vrot.slane %v777, 6
        %v780 = vshll.u32 %v774, 16
        %v782 = vrot.slane %v780, 7
        %v783 = vor.u32 %v779, %v782
        %v784 = vshrl.u32 %v775, 16
        %v786 = vrot.slane %v784, 6
        %v787 = vshll.u32 %v775, 16
        %v789 = vrot.slane %v787, 7
        %v790 = vor.u32 %v786, %v789
        %v791 = vshrl.u32 %v776, 16
        %v793 = vrot.slane %v791, 6
        %v794 = vshll.u32 %v776, 16
        %v796 = vrot.slane %v794, 7
        %v797 = vor.u32 %v793, %v796
        %798 = vrot.lane.b32.xlu0 %v783, 127
        %v799 = vpop.permute.xlu0 %798
        %800 = vrot.lane.b32.xlu0 %v790, 127
        %v801 = vpop.permute.xlu0 %800
        %802 = vrot.lane.b32.xlu0 %v797, 127
        %v803 = vpop.permute.xlu0 %802
        %v804 = vsel %vm230, %v799, %v801
        %v805 = vsel %vm230, %v801, %v803
        %809 = vst [vmem:[#allocation1] ss:$4 sm:$0xff] %v189
        %v810 = vld.sshfl [vmem:[#allocation1] sm:$0xff pattern:$0x73625140]
        %v812 = vld.sshfl [vmem:[#allocation1 + $0x8] sm:$0xff pattern:$0x73625140]
        %v814 = vld.sshfl [vmem:[#allocation1 + $0x10] sm:$0xff pattern:$0x73625140]
        %v816 = vrot.slane %v810, 5
        %v817 = vrot.slane %v812, 5
        %v818 = vrot.slane %v814, 5
        %819 = vrot.lane.b32.xlu0 %v816, 126
        %v820 = vpop.permute.xlu0 %819
        %821 = vrot.lane.b32.xlu0 %v817, 126
        %v822 = vpop.permute.xlu0 %821
        %823 = vrot.lane.b32.xlu0 %v818, 126
        %v824 = vpop.permute.xlu0 %823
        %v825 = vsel %vm252, %v820, %v822
        %v826 = vsel %vm252, %v822, %v824
        %827 = vst [vmem:[#allocation1] ss:$4 sm:$0xff] %v189
        %v828 = vld.sshfl [vmem:[#allocation1] sm:$0xff pattern:$0x73625140]
        %v829 = vld.sshfl [vmem:[#allocation1 + $0x8] sm:$0xff pattern:$0x73625140]
        %v830 = vld.sshfl [vmem:[#allocation1 + $0x10] sm:$0xff pattern:$0x73625140]
        %v831 = vshrl.u32 %v828, 16
        %v833 = vrot.slane %v831, 3
        %v834 = vshll.u32 %v828, 16
        %v836 = vrot.slane %v834, 4
        %v837 = vor.u32 %v833, %v836
        %v838 = vshrl.u32 %v829, 16
        %v840 = vrot.slane %v838, 3
        %v841 = vshll.u32 %v829, 16
        %v843 = vrot.slane %v841, 4
        %v844 = vor.u32 %v840, %v843
        %v845 = vshrl.u32 %v830, 16
        %v847 = vrot.slane %v845, 3
        %v848 = vshll.u32 %v830, 16
        %v850 = vrot.slane %v848, 4
        %v851 = vor.u32 %v847, %v850
        %852 = vrot.lane.b32.xlu0 %v837, 125
        %v853 = vpop.permute.xlu0 %852
        %854 = vrot.lane.b32.xlu0 %v844, 125
        %v855 = vpop.permute.xlu0 %854
        %856 = vrot.lane.b32.xlu0 %v851, 125
        %v857 = vpop.permute.xlu0 %856
        %v858 = vsel %vm286, %v853, %v855
        %v859 = vsel %vm286, %v855, %v857
        %s864 = scalar_lea.vmem [#allocation1], 3
        %865 = vst [vmem:[%s864] ss:$4 sm:$0xff] %v190
        %v866 = vld.sshfl [vmem:[#allocation1] sm:$0xff pattern:$0x73625140]
        %v868 = vld.sshfl [vmem:[#allocation1 + $0x8] sm:$0xff pattern:$0x73625140]
        %v870 = vld.sshfl [vmem:[#allocation1 + $0x10] sm:$0xff pattern:$0x73625140]
        %v872 = vld.sshfl [vmem:[#allocation1 + $0x18] sm:$0xff pattern:$0x73625140]
        %874 = vrot.lane.b32.xlu0 %v866, 109
        %v875 = vpop.permute.xlu0 %874
        %876 = vrot.lane.b32.xlu0 %v868, 109
        %v877 = vpop.permute.xlu0 %876
        %878 = vrot.lane.b32.xlu0 %v870, 109
        %v879 = vpop.permute.xlu0 %878
        %880 = vrot.lane.b32.xlu0 %v872, 109
        %v881 = vpop.permute.xlu0 %880
        %vm882 = vcmask 891904
        %v883 = vsel %vm882, %v875, %v877
        %v884 = vsel %vm882, %v877, %v879
        %v885 = vsel %vm882, %v879, %v881
        %886 = vst [vmem:[#allocation1] ss:$4 sm:$0xff] %v190
        %v887 = vld.sshfl [vmem:[#allocation1] sm:$0xff pattern:$0x73625140]
        %v888 = vld.sshfl [vmem:[#allocation1 + $0x8] sm:$0xff pattern:$0x73625140]
        %v889 = vld.sshfl [vmem:[#allocation1 + $0x10] sm:$0xff pattern:$0x73625140]
        %v890 = vld.sshfl [vmem:[#allocation1 + $0x18] sm:$0xff pattern:$0x73625140]
        %v891 = vshll.u32 %v887, 16
        %v893 = vrot.slane %v891, 1
        %v894 = vshll.u32 %v888, 16
        %v896 = vrot.slane %v894, 1
        %v897 = vshll.u32 %v889, 16
        %v899 = vrot.slane %v897, 1
        %v900 = vshll.u32 %v890, 16
        %v902 = vrot.slane %v900, 1
        %v903 = vshrl.u32 %v887, 16
        %v905 = vor.u32 %v903, %v893
        %v906 = vshrl.u32 %v888, 16
        %v908 = vor.u32 %v906, %v896
        %v909 = vshrl.u32 %v889, 16
        %v911 = vor.u32 %v909, %v899
        %v912 = vshrl.u32 %v890, 16
        %v914 = vor.u32 %v912, %v902
        %915 = vrot.lane.b32.xlu0 %v893, 108
        %v916 = vpop.permute.xlu0 %915
        %917 = vrot.lane.b32.xlu0 %v896, 108
        %v918 = vpop.permute.xlu0 %917
        %919 = vrot.lane.b32.xlu0 %v899, 108
        %v920 = vpop.permute.xlu0 %919
        %921 = vrot.lane.b32.xlu0 %v902, 108
        %v922 = vpop.permute.xlu0 %921
        %923 = vrot.lane.b32.xlu0 %v905, 108
        %v924 = vpop.permute.xlu0 %923
        %925 = vrot.lane.b32.xlu0 %v908, 108
        %v926 = vpop.permute.xlu0 %925
        %927 = vrot.lane.b32.xlu0 %v911, 108
        %v928 = vpop.permute.xlu0 %927
        %929 = vrot.lane.b32.xlu0 %v914, 108
        %v930 = vpop.permute.xlu0 %929
        %v931 = vsel %vm343, %v916, %v918
        %v932 = vsel %vm343, %v918, %v920
        %v933 = vsel %vm343, %v920, %v922
        %v934 = vsel %vm343, %v924, %v926
        %v935 = vsel %vm343, %v926, %v928
        %v936 = vsel %vm343, %v928, %v930
        %940 = vst [vmem:[#allocation1] ss:$4 sm:$0xff] %v190
        %v941 = vld.sshfl [vmem:[#allocation1] sm:$0xff pattern:$0x73625140]
        %v943 = vld.sshfl [vmem:[#allocation1 + $0x8] sm:$0xff pattern:$0x73625140]
        %v945 = vld.sshfl [vmem:[#allocation1 + $0x10] sm:$0xff pattern:$0x73625140]
        %v947 = vld.sshfl [vmem:[#allocation1 + $0x18] sm:$0xff pattern:$0x73625140]
        %v949 = vrot.slane %v941, 7
        %v950 = vrot.slane %v943, 7
        %v951 = vrot.slane %v945, 7
        %v952 = vrot.slane %v947, 7
        %953 = vrot.lane.b32.xlu0 %v949, 107
        %v954 = vpop.permute.xlu0 %953
        %955 = vrot.lane.b32.xlu0 %v950, 107
        %v956 = vpop.permute.xlu0 %955
        %957 = vrot.lane.b32.xlu0 %v951, 107
        %v958 = vpop.permute.xlu0 %957
        %959 = vrot.lane.b32.xlu0 %v952, 107
        %v960 = vpop.permute.xlu0 %959
        %v961 = vsel %vm367, %v954, %v956
        %v962 = vsel %vm367, %v956, %v958
        %v963 = vsel %vm367, %v958, %v960
        %964 = vst [vmem:[#allocation1] ss:$4 sm:$0xff] %v190
        %v965 = vld.sshfl [vmem:[#allocation1] sm:$0xff pattern:$0x73625140]
        %v966 = vld.sshfl [vmem:[#allocation1 + $0x8] sm:$0xff pattern:$0x73625140]
        %v967 = vld.sshfl [vmem:[#allocation1 + $0x10] sm:$0xff pattern:$0x73625140]
        %v968 = vld.sshfl [vmem:[#allocation1 + $0x18] sm:$0xff pattern:$0x73625140]
        %v969 = vshrl.u32 %v965, 16
        %v971 = vrot.slane %v969, 5
        %v972 = vshll.u32 %v965, 16
        %v974 = vrot.slane %v972, 6
        %v975 = vor.u32 %v971, %v974
        %v976 = vshrl.u32 %v966, 16
        %v978 = vrot.slane %v976, 5
        %v979 = vshll.u32 %v966, 16
        %v981 = vrot.slane %v979, 6
        %v982 = vor.u32 %v978, %v981
        %v983 = vshrl.u32 %v967, 16
        %v985 = vrot.slane %v983, 5
        %v986 = vshll.u32 %v967, 16
        %v988 = vrot.slane %v986, 6
        %v989 = vor.u32 %v985, %v988
        %v990 = vshrl.u32 %v968, 16
        %v992 = vrot.slane %v990, 5
        %v993 = vshll.u32 %v968, 16
        %v995 = vrot.slane %v993, 6
        %v996 = vor.u32 %v992, %v995
        %997 = vrot.lane.b32.xlu0 %v975, 106
        %v998 = vpop.permute.xlu0 %997
        %999 = vrot.lane.b32.xlu0 %v982, 106
        %v1000 = vpop.permute.xlu0 %999
        %1001 = vrot.lane.b32.xlu0 %v989, 106
        %v1002 = vpop.permute.xlu0 %1001
        %1003 = vrot.lane.b32.xlu0 %v996, 106
        %v1004 = vpop.permute.xlu0 %1003
        %v1005 = vsel %vm401, %v998, %v1000
        %v1006 = vsel %vm401, %v1000, %v1002
        %v1007 = vsel %vm401, %v1002, %v1004
        %s1011 = scalar_lea.vmem [#allocation1], 2
        %1012 = vst [vmem:[%s1011] ss:$4 sm:$0xff] %v190
        %v1013 = vld.sshfl [vmem:[#allocation1] sm:$0xff pattern:$0x73625140]
        %v1015 = vld.sshfl [vmem:[#allocation1 + $0x8] sm:$0xff pattern:$0x73625140]
        %v1017 = vld.sshfl [vmem:[#allocation1 + $0x10] sm:$0xff pattern:$0x73625140]
        %v1019 = vld.sshfl [vmem:[#allocation1 + $0x18] sm:$0xff pattern:$0x73625140]
        %1021 = vrot.lane.b32.xlu0 %v1013, 105
        %v1022 = vpop.permute.xlu0 %1021
        %1023 = vrot.lane.b32.xlu0 %v1015, 105
        %v1024 = vpop.permute.xlu0 %1023
        %1025 = vrot.lane.b32.xlu0 %v1017, 105
        %v1026 = vpop.permute.xlu0 %1025
        %1027 = vrot.lane.b32.xlu0 %v1019, 105
        %v1028 = vpop.permute.xlu0 %1027
        %v1029 = vsel %vm421, %v1022, %v1024
        %v1030 = vsel %vm421, %v1024, %v1026
        %v1031 = vsel %vm421, %v1026, %v1028
        %v1032 = vsel %vm629, %v767, %v804
        %v1033 = vsel %vm629, %v768, %v805
        %v1034 = vsel %vm629, %v769, %v803
        %v1037 = vsel %vm633, %v1032, %v825
        %v1041 = vsel %vm633, %v1033, %v826
        %v1045 = vsel %vm633, %v1034, %v824
        %v1047 = vsel %vm648, %v1037, %v858
        %v1048 = vsel %vm648, %v1041, %v859
        %v1049 = vsel %vm648, %v1045, %v857
        %v1052 = vsel %vm652, %v1047, %v883
        %v1056 = vsel %vm652, %v1048, %v884
        %v1060 = vsel %vm652, %v1049, %v885
        %v1062 = vsel %vm667, %v1052, %v931
        %v1063 = vsel %vm667, %v1056, %v932
        %v1064 = vsel %vm667, %v1060, %v933
        %v1067 = vsel %vm671, %v934, %v961
        %v1071 = vsel %vm671, %v935, %v962
        %v1075 = vsel %vm671, %v936, %v963
        %v1077 = vsel %vm686, %v1067, %v1005
        %v1078 = vsel %vm686, %v1071, %v1006
        %v1079 = vsel %vm686, %v1075, %v1007
        %v1082 = vsel %vm690, %v1077, %v1029
        %v1085 = vsel %vm690, %v1078, %v1030
        %v1088 = vsel %vm690, %v1079, %v1031
        %1095 = vrot.lane.b32.xlu0 %v1062, 67
        %v1096 = vpop.permute.xlu0 %1095
        %1097 = vrot.lane.b32.xlu0 %v1063, 67
        %v1098 = vpop.permute.xlu0 %1097
        %1099 = vrot.lane.b32.xlu0 %v1064, 67
        %v1100 = vpop.permute.xlu0 %1099
        %1101 = vrot.lane.b32.xlu0 %v1082, 67
        %v1102 = vpop.permute.xlu0 %1101
        %1103 = vrot.lane.b32.xlu0 %v1085, 67
        %v1104 = vpop.permute.xlu0 %1103
        %1105 = vrot.lane.b32.xlu0 %v1088, 67
        %v1106 = vpop.permute.xlu0 %1105
        %vm1107 = vcmask 547840
        %v1108 = vsel %vm1107, %v1096, %v1098
        %v1109 = vsel %vm1107, %v1098, %v1100
        %v1110 = vsel %vm1107, %v1102, %v1104
        %v1111 = vsel %vm1107, %v1104, %v1106
        %v1115 = vld [vmem:[#allocation2] sm:$0xf]
        %v1116 = vld [vmem:[#allocation2 + $0x4] sm:$0xf]
        %v1117 = vld [vmem:[#allocation2 + $0x8] sm:$0xf]
        %v1118 = vld [vmem:[#allocation2 + $0xc] sm:$0xf]
        %v1119 = vld [vmem:[#allocation2 + $0x10] sm:$0xf]
        %v1120 = vld [vmem:[#allocation2 + $0x14] sm:$0xf]
        %v1121 = vld [vmem:[#allocation2 + $0x18] sm:$0xf]
        %v1122 = vld [vmem:[#allocation2 + $0x1c] sm:$0xf]
        %v1131 = vunpack.c.l.b16 %v1115
        %v1132 = vunpack.c.l.b16 %v1116
        %v1133 = vunpack.c.l.b16 %v1117
        %v1134 = vunpack.c.l.b16 %v1118
        %v1135 = vunpack.c.l.b16 %v1119
        %v1136 = vunpack.c.l.b16 %v1120
        %v1137 = vunpack.c.l.b16 %v1121
        %v1138 = vunpack.c.l.b16 %v1122
        %v1139 = vpack.c.b16 %v1132, %v1131
        %v1140 = vpack.c.b16 %v1134, %v1133
        %v1141 = vpack.c.b16 %v1136, %v1135
        %v1142 = vpack.c.b16 %v1138, %v1137
        %vm1143 = vcmask 613376
        %v1145 = vsel %vm1143, %v1139, 0
        %v1148 = vsel %vm1143, %v1140, 0
        %v1151 = vsel %vm1143, %v1141, 0
        %v1154 = vsel %vm1143, %v1142, 0
        %v1156 = vsel %vm747, 4294967295, 65535
        %v1157 = vsel %vm652, %v1156, 0
        %v1159 = vand.u32 %v1110, %v1157
        %v1162 = vand.u32 %v1111, %v1157
        %v1165 = vand.u32 %v1106, %v1157
        %1167 = vmatpush.bf16.msra.mxu0 0
        %1168 = vmatpush.bf16.msra.mxu0 0
        %1169 = vmatpush.bf16.msra.mxu0 0
        %1170 = vmatpush.bf16.msra.mxu0 %v1159
        %1171 = vmatpush.bf16.msra.mxu0 %v1108
        %1172 = vmatpush.bf16.msra.mxu0 %v763
        %1173 = vmatpush.bf16.msra.mxu0 %v712
        %1174 = vmatpush.bf16.msra.mxu0 %v668
        %1175 = vmatmul.bf16.gmra.mxu0 %v1145
        %v1176 = vpop.f32.mrf.mxu0
        %v1177 = vadd.f32 0.0, %v1176
        %v1178 = vpop.f32.mrf.mxu0
        %v1179 = vadd.f32 0.0, %v1178
        %1180 = vmatmul.bf16.gmra.mxu0 %v1148
        %v1181 = vpop.f32.mrf.mxu0
        %v1182 = vadd.f32 0.0, %v1181
        %v1183 = vpop.f32.mrf.mxu0
        %v1184 = vadd.f32 0.0, %v1183
        %1185 = vmatmul.bf16.gmra.mxu0 %v1151
        %v1186 = vpop.f32.mrf.mxu0
        %v1187 = vadd.f32 0.0, %v1186
        %v1188 = vpop.f32.mrf.mxu0
        %v1189 = vadd.f32 0.0, %v1188
        %1190 = vmatmul.bf16.gmra.mxu0 %v1154
        %v1191 = vpop.f32.mrf.mxu0
        %v1192 = vadd.f32 0.0, %v1191
        %v1193 = vpop.f32.mrf.mxu0
        %v1194 = vadd.f32 0.0, %v1193
        %1195 = vdwg.mxu0
        %1196 = vmatpush.bf16.msra.mxu0 0
        %1197 = vmatpush.bf16.msra.mxu0 0
        %1198 = vmatpush.bf16.msra.mxu0 0
        %1199 = vmatpush.bf16.msra.mxu0 %v1162
        %1200 = vmatpush.bf16.msra.mxu0 %v1109
        %1201 = vmatpush.bf16.msra.mxu0 %v764
        %1202 = vmatpush.bf16.msra.mxu0 %v716
        %1203 = vmatpush.bf16.msra.mxu0 %v669
        %1204 = vmatmul.bf16.gmra.mxu0 %v1145
        %v1205 = vpop.f32.mrf.mxu0
        %v1206 = vadd.f32 0.0, %v1205
        %v1207 = vpop.f32.mrf.mxu0
        %v1208 = vadd.f32 0.0, %v1207
        %1209 = vmatmul.bf16.gmra.mxu0 %v1148
        %v1210 = vpop.f32.mrf.mxu0
        %v1211 = vadd.f32 0.0, %v1210
        %v1212 = vpop.f32.mrf.mxu0
        %v1213 = vadd.f32 0.0, %v1212
        %1214 = vmatmul.bf16.gmra.mxu0 %v1151
        %v1215 = vpop.f32.mrf.mxu0
        %v1216 = vadd.f32 0.0, %v1215
        %v1217 = vpop.f32.mrf.mxu0
        %v1218 = vadd.f32 0.0, %v1217
        %1219 = vmatmul.bf16.gmra.mxu0 %v1154
        %v1220 = vpop.f32.mrf.mxu0
        %v1221 = vadd.f32 0.0, %v1220
        %v1222 = vpop.f32.mrf.mxu0
        %v1223 = vadd.f32 0.0, %v1222
        %1224 = vdwg.mxu0
        %1225 = vmatpush.bf16.msra.mxu0 0
        %1226 = vmatpush.bf16.msra.mxu0 0
        %1227 = vmatpush.bf16.msra.mxu0 0
        %1228 = vmatpush.bf16.msra.mxu0 %v1165
        %1229 = vmatpush.bf16.msra.mxu0 %v1100
        %1230 = vmatpush.bf16.msra.mxu0 %v765
        %1231 = vmatpush.bf16.msra.mxu0 %v720
        %1232 = vmatpush.bf16.msra.mxu0 %v670
        %1233 = vmatmul.bf16.gmra.mxu0 %v1145
        %v1234 = vpop.f32.mrf.mxu0
        %v1235 = vadd.f32 0.0, %v1234
        %v1236 = vpop.f32.mrf.mxu0
        %v1237 = vadd.f32 0.0, %v1236
        %1238 = vmatmul.bf16.gmra.mxu0 %v1148
        %v1239 = vpop.f32.mrf.mxu0
        %v1240 = vadd.f32 0.0, %v1239
        %v1241 = vpop.f32.mrf.mxu0
        %v1242 = vadd.f32 0.0, %v1241
        %1243 = vmatmul.bf16.gmra.mxu0 %v1151
        %v1244 = vpop.f32.mrf.mxu0
        %v1245 = vadd.f32 0.0, %v1244
        %v1246 = vpop.f32.mrf.mxu0
        %v1247 = vadd.f32 0.0, %v1246
        %1248 = vmatmul.bf16.gmra.mxu0 %v1154
        %v1249 = vpop.f32.mrf.mxu0
        %v1250 = vadd.f32 0.0, %v1249
        %v1251 = vpop.f32.mrf.mxu0
        %v1252 = vadd.f32 0.0, %v1251
        %1253 = vdwg.mxu0
        %v1254 = vpack.c.bf16 %v1206, %v1177
        %v1255 = vpack.c.bf16 %v1235, %v1235
        %v1256 = vpack.c.bf16 %v1208, %v1179
        %v1257 = vpack.c.bf16 %v1237, %v1237
        %v1258 = vpack.c.bf16 %v1211, %v1182
        %v1259 = vpack.c.bf16 %v1240, %v1240
        %v1260 = vpack.c.bf16 %v1213, %v1184
        %v1261 = vpack.c.bf16 %v1242, %v1242
        %v1262 = vpack.c.bf16 %v1216, %v1187
        %v1263 = vpack.c.bf16 %v1245, %v1245
        %v1264 = vpack.c.bf16 %v1218, %v1189
        %v1265 = vpack.c.bf16 %v1247, %v1247
        %v1266 = vpack.c.bf16 %v1221, %v1192
        %v1267 = vpack.c.bf16 %v1250, %v1250
        %v1268 = vpack.c.bf16 %v1223, %v1194
        %v1269 = vpack.c.bf16 %v1252, %v1252
        %1270 = vst [vmem:[%s177] sm:$0xff] %v1254
        %vm1271 = vcmask 519168
        %1272 = vst.msk [vmem:[%s177 + $0x8] sm:$0xf] %vm1271, %v1255
        %1273 = vst [vmem:[%s177 + $0xc] sm:$0xff] %v1256
        %1274 = vst.msk [vmem:[%s177 + $0x14] sm:$0xf] %vm1271, %v1257
        %1275 = vst [vmem:[%s177 + $0x18] sm:$0xff] %v1258
        %1276 = vst.msk [vmem:[%s177 + $0x20] sm:$0xf] %vm1271, %v1259
        %1277 = vst [vmem:[%s177 + $0x24] sm:$0xff] %v1260
        %1278 = vst.msk [vmem:[%s177 + $0x2c] sm:$0xf] %vm1271, %v1261
        %1279 = vst [vmem:[%s177 + $0x30] sm:$0xff] %v1262
        %1280 = vst.msk [vmem:[%s177 + $0x38] sm:$0xf] %vm1271, %v1263
        %1281 = vst [vmem:[%s177 + $0x3c] sm:$0xff] %v1264
        %1282 = vst.msk [vmem:[%s177 + $0x44] sm:$0xf] %vm1271, %v1265
        %1283 = vst [vmem:[%s177 + $0x48] sm:$0xff] %v1266
        %1284 = vst.msk [vmem:[%s177 + $0x50] sm:$0xf] %vm1271, %v1267
        %1285 = vst [vmem:[%s177 + $0x54] sm:$0xff] %v1268
        %1286 = vst.msk [vmem:[%s177 + $0x5c] sm:$0xf] %vm1271, %v1269
        %s1287 = sand.u32 %s88, 1
        %s1288 = scalar_lea.sflag [#allocation4], %s1287
        %s1289 = sand.u32 %s88, 1
        %s1290 = smul.addr %s1289, 96
        %s1291 = scalar_lea.vmem [#allocation5], %s1290
        // Predicated region
        $region33: #{tpu_custom_call.1} parent=27 // pred_check
          %p1292 = pneg %p98
        $region34: #{tpu_custom_call.1} parent=27 // pred_check_branch
          %1294 = sbr.rel (%p1292) target = $region36
        $region35: #{tpu_custom_call.1} parent=27 // pred_region
          %s1295 = smul.u32 3, %s22
          %1297 = vsyncadd %s1288, 0
          %s1298 = smul.addr %s21, 24
          %s1299 = sadd.s32 %s1295, %s1298
          %s1300 = smul.addr %s1299, 4
          %s1301 = scalar_lea.hbm %s2, %s1300
          %s1302 = sshll.u32 %s1291, 4
          %s1303 = int_to_ptr.vmem [resolvable:$true] %s1302
          %s1304 = sshll.u32 %s1301, 4
          %s1305 = int_to_ptr.hbm [resolvable:$true] %s1304
          %1310 = dma.vmem_to_hbm [thread:$0]  %s1303, 1536, %s1305, %s1288, 192, 192, 12
        $region36: #{tpu_custom_call.1} parent=27 // pred_fallthru
          _
      $region28: #{tpu_custom_call.1} parent=5 // pred_fallthru
        _
      %p1311 = scmp.le.s32.totalorder 2, %s12
      // Predicated region
      $region37: #{tpu_custom_call.1} parent=5 // pred_check
        %p1312 = pneg %p1311
      $region38: #{tpu_custom_call.1} parent=5 // pred_check_branch
        %1314 = sbr.rel (%p1312) target = $region40
      $region39: #{tpu_custom_call.1} parent=5 // pred_region
        %s1315 = ssub.s32 %s12, 2
        // Predicated region
        $region41: #{tpu_custom_call.1} parent=39 // pred_check
          %p1316 = pneg %p104
        $region42: #{tpu_custom_call.1} parent=39 // pred_check_branch
          %1318 = sbr.rel (%p1316) target = $region44
        $region43: #{tpu_custom_call.1} parent=39 // pred_region
          %s1319 = sand.u32 %s89, 1
          %s1320 = scalar_lea.sflag [#allocation4], %s1319
          %s1321 = sand.u32 %s89, 1
          %s1322 = smul.addr %s1321, 96
          %s1323 = scalar_lea.vmem [#allocation5], %s1322
          %1325 = dma.done %s1320, 1536
        $region44: #{tpu_custom_call.1} parent=39 // pred_fallthru
          _
      $region40: #{tpu_custom_call.1} parent=5 // pred_fallthru
        _
    $region6: #{tpu_custom_call.1} parent=1 // loop_footer
      %s16 = sadd.s32 1, %s12
    $region7: #{tpu_custom_call.1} parent=1 // loop_footer_branch
      %11 = sbr.rel target = $region3
    $region8: #{tpu_custom_call.1} parent=1 // loop_exit
      _
    %1326 = vsyncpa [#allocation3], 1
    %s1327 = scalar_lea.sflag [#allocation3], 1
    %1328 = vsyncpa %s1327, 1
    %1329 = vsyncpa [#allocation4], 1
    %s1330 = scalar_lea.sflag [#allocation4], 1
    %1331 = vsyncpa %s1330, 1

</llo_original>
